<compile_context>
chip_gen: v5e
topology: v5e:2x2
jax: 0.10.0
libtpu: 0.0.40
codegen_flags: <defaults>
</compile_context>

<pallas_src>
import math
import functools

import jax
import jax.numpy as jnp
from jax.experimental import pallas as pl
from jax.experimental.pallas import tpu as pltpu


# ---------------------------------------------------------------------------
# Parameter setup (plain JAX glue): sinusoidal PE table, same math as the
# PyTorch __init__.  Stored as (max_len, d_model); PyTorch's (max_len, 1,
# d_model) buffer is the same table with an explicit broadcast axis.
# ---------------------------------------------------------------------------
def make_pe_table(d_model: int, max_len: int) -> jnp.ndarray:
    position = jnp.arange(0, max_len, dtype=jnp.float32)[:, None]            # (L, 1)
    div_term = jnp.exp(
        jnp.arange(0, d_model, 2, dtype=jnp.float32) * (-math.log(10000.0) / d_model)
    )                                                                         # (D/2,)
    pe = jnp.zeros((max_len, d_model), dtype=jnp.float32)
    pe = pe.at[:, 0::2].set(jnp.sin(position * div_term))
    pe = pe.at[:, 1::2].set(jnp.cos(position * div_term))
    return pe                                                                 # (L, D)


# ---------------------------------------------------------------------------
# Pallas kernels
# ---------------------------------------------------------------------------
def _pe_add_kernel(x_ref, pe_ref, o_ref, *, batch: int):
    # x_ref/o_ref: (tS, batch*d_model), pe_ref: (tS, d_model).
    pe = pe_ref[...]
    pe_full = jnp.concatenate([pe] * batch, axis=1) if batch > 1 else pe
    o_ref[...] = (x_ref[...] + pe_full).astype(o_ref.dtype)


def _pe_add_dropout_kernel(x_ref, pe_ref, bits_ref, o_ref, *,
                           batch: int, threshold: int, scale: float):
    # Whole-block math: one add, one uint32 threshold compare, one select,
    # one lane-dense store per tile.
    pe = pe_ref[...]
    pe_full = jnp.concatenate([pe] * batch, axis=1) if batch > 1 else pe
    y = x_ref[...] + pe_full
    keep = bits_ref[...] >= jnp.uint32(threshold)          # P(keep) = 1 - p
    o_ref[...] = jnp.where(keep, y * scale, jnp.zeros_like(y)).astype(o_ref.dtype)


# ---------------------------------------------------------------------------
# Wrapper
# ---------------------------------------------------------------------------
def _choose_tile_rows(seq_len: int, row_bytes: int, itemsize: int,
                      max_tile_bytes: int = 2 * 1024 * 1024) -> int:
    """Largest row tile whose per-buffer footprint stays ~<= 2 MiB, bounded
    only by seq_len, rounded to the dtype's packed sublane multiple."""
    mult = max(8, 32 // max(itemsize, 1))          # 8 (f32), 16 (bf16), 32 (int8)
    rows = max(mult, max_tile_bytes // max(row_bytes, 1))
    rows = min(rows, seq_len)
    if rows >= mult:
        rows -= rows % mult
    else:
        rows = seq_len                              # tiny-S: full-extent block
    return max(rows, 1)


def positional_encoding(x, pe_table, dropout_p: float = 0.1,
                        training: bool = False, seed: int = 0):
    """x: (seq_len, batch, d_model).  pe_table: (max_len, d_model)."""
    S, B, D = x.shape
    assert pe_table.shape[0] >= S and pe_table.shape[1] == D

    # Lane-dense layout: fold batch into the lane axis, sequence -> sublanes.
    x2 = x.reshape(S, B * D)
    itemsize = x2.dtype.itemsize

    # pe in x's dtype (halves pe HBM traffic / VMEM buffers for bf16 inputs).
    pe_use = pe_table if pe_table.dtype == x.dtype else pe_table.astype(x.dtype)

    tS = _choose_tile_rows(S, B * D * itemsize, itemsize)
    pe2 = pe_use
    if tS % 8 != 0:
        # Tiny-S fallback (tS == S < 8): pe block must equal the full array
        # extent to satisfy the (8, 128) block-divisibility rule.
        pe2 = pe_use[:S]
    grid = (pl.cdiv(S, tS),)

    x_spec = pl.BlockSpec((tS, B * D), lambda i: (i, 0))
    pe_spec = pl.BlockSpec((tS, D), lambda i: (i, 0))     # rows straight from the table
    out_spec = pl.BlockSpec((tS, B * D), lambda i: (i, 0))
    cparams = pltpu.CompilerParams(dimension_semantics=("parallel",))

    base_bytes = 2 * S * B * D * itemsize + S * D * pe2.dtype.itemsize

    if (not training) or dropout_p == 0.0:
        # Eval mode: dropout is identity -> tiled broadcast add.
        out2 = pl.pallas_call(
            functools.partial(_pe_add_kernel, batch=B),
            out_shape=jax.ShapeDtypeStruct((S, B * D), x.dtype),
            grid=grid,
            in_specs=[x_spec, pe_spec],
            out_specs=out_spec,
            compiler_params=cparams,
            cost_estimate=pl.CostEstimate(flops=S * B * D, transcendentals=0,
                                          bytes_accessed=base_bytes),
        )(x2, pe2)
        return out2.reshape(S, B, D)

    # Training mode: inverted dropout.  Random bits are generated wrapper-side
    # (portable: pltpu.prng_* has no interpret/CPU lowering) and streamed
    # through the same tiled pipeline as x.
    p = float(dropout_p)
    threshold = min(int(round(p * (1 << 32))), (1 << 32) - 1)
    scale = 1.0 / (1.0 - p)
    bits = jax.random.bits(jax.random.PRNGKey(seed), (S, B * D), dtype=jnp.uint32)
    out2 = pl.pallas_call(
        functools.partial(_pe_add_dropout_kernel, batch=B,
                          threshold=threshold, scale=scale),
        out_shape=jax.ShapeDtypeStruct((S, B * D), x.dtype),
        grid=grid,
        in_specs=[x_spec, pe_spec, x_spec],       # bits tiled exactly like x
        out_specs=out_spec,
        compiler_params=cparams,
        cost_estimate=pl.CostEstimate(flops=3 * S * B * D, transcendentals=0,
                                      bytes_accessed=base_bytes + S * B * D * 4),
    )(x2, pe2, bits)
    return out2.reshape(S, B, D)


# ---------------------------------------------------------------------------
# Main
# ---------------------------------------------------------------------------
if __name__ == "__main__":
    SEQ, BATCH, D_MODEL, MAX_LEN = 8, 2, 32, 64
    DROPOUT_P = 0.1

    key = jax.random.PRNGKey(0)
    x = jax.random.normal(key, (SEQ, BATCH, D_MODEL), dtype=jnp.float32)
    pe_table = make_pe_table(D_MODEL, MAX_LEN)

    # Pure-JAX reference: x + pe (broadcast over batch).
    ref = x + pe_table[:SEQ][:, None, :]

    # Eval mode (PyTorch nn.Dropout is identity in eval()).
    fwd_eval = jax.jit(
        lambda xx, pe: positional_encoding(xx, pe, dropout_p=DROPOUT_P, training=False))
    out = jax.block_until_ready(fwd_eval(x, pe_table))
    assert out.shape == (SEQ, BATCH, D_MODEL)
    assert jnp.allclose(out, ref, atol=1e-6), "eval-mode mismatch vs reference"

    # Training mode: kept elements equal ref / (1 - p); dropped are exactly 0.
    fwd_train = jax.jit(
        lambda xx, pe: positional_encoding(xx, pe, dropout_p=DROPOUT_P,
                                           training=True, seed=123))
    out_tr = jax.block_until_ready(fwd_train(x, pe_table))
    scale = 1.0 / (1.0 - DROPOUT_P)
    kept = out_tr != 0.0
    assert jnp.allclose(jnp.where(kept, out_tr, ref * scale), ref * scale, atol=1e-5), \
        "training-mode kept elements do not match ref / (1 - p)"
    keep_frac = float(jnp.mean(kept.astype(jnp.float32)))
    assert 0.6 <= keep_frac <= 1.0, f"implausible dropout keep fraction {keep_frac}"

    print("KERNEL_OK")
</pallas_src>

<mosaic_0001>
module attributes {stable_mosaic.version = 11 : i64} {
  func.func @_pe_add_kernel(%arg0: i32, %arg1: memref<8x64xf32, #tpu.memory_space<vmem>>, %arg2: memref<8x32xf32, #tpu.memory_space<vmem>>, %arg3: memref<8x64xf32, #tpu.memory_space<vmem>>) attributes {dimension_semantics = [#tpu.dimension_semantics<parallel>], iteration_bounds = array<i64: 1>, scalar_prefetch = 0 : i64, scratch_operands = 0 : i64, tpu.core_type = #tpu.core_type<tc>, window_params = [{transform_indices = @transform_0, window_bounds = array<i64: 8, 64>}, {transform_indices = @transform_1, window_bounds = array<i64: 8, 32>}, {transform_indices = @transform_2, window_bounds = array<i64: 8, 64>}]} {
    %c0 = arith.constant 0 : index
    %c0_0 = arith.constant 0 : index
    %0 = vector.load %arg2[%c0, %c0_0] : memref<8x32xf32, #tpu.memory_space<vmem>>, vector<8x32xf32>
    %1 = tpu.concatenate %0, %0 in 1 : vector<8x32xf32>, vector<8x32xf32> -> vector<8x64xf32>
    %c0_1 = arith.constant 0 : index
    %c0_2 = arith.constant 0 : index
    %2 = vector.load %arg1[%c0_1, %c0_2] : memref<8x64xf32, #tpu.memory_space<vmem>>, vector<8x64xf32>
    %3 = arith.addf %2, %1 : vector<8x64xf32>
    %c0_3 = arith.constant 0 : index
    %c0_4 = arith.constant 0 : index
    %4 = vector.load %arg3[%c0_3, %c0_4] : memref<8x64xf32, #tpu.memory_space<vmem>>, vector<8x64xf32>
    tpu.vector_store %arg3[%c0_3, %c0_4], %3 {strides = array<i32>} : memref<8x64xf32, #tpu.memory_space<vmem>>, vector<8x64xf32>,
    return
  }
  func.func @transform_0(%arg0: i32) -> (i32, i32) {
    %c0_i32 = arith.constant 0 : i32
    %c0_i32_0 = arith.constant 0 : i32
    return %arg0, %c0_i32 : i32, i32
  }
  func.func @transform_1(%arg0: i32) -> (i32, i32) {
    %c0_i32 = arith.constant 0 : i32
    %c0_i32_0 = arith.constant 0 : i32
    return %arg0, %c0_i32 : i32, i32
  }
  func.func @transform_2(%arg0: i32) -> (i32, i32) {
    %c0_i32 = arith.constant 0 : i32
    %c0_i32_0 = arith.constant 0 : i32
    return %arg0, %c0_i32 : i32, i32
  }
}

</mosaic_0001>

<llo_original>
// kernel: _lambda_.1
$region0: #{_lambda_.1}
  #allocation0 [shape = 'u32[]', space=smem, size = 0x4, offset = 0x4, fixed_abs, tag = 'smem constant byte address 0x4 - core index']
  #allocation1 [shape = 'u32[72,128]{1,0:T(1,128)}', space=vmem, size = 0x9000, scoped, tag = 'internal scratch']
  %s0 = inlined_call_operand.vmem [shape: f32[8,64], index: 0, kind: input, shape index: {}]
  %s1 = inlined_call_operand.vmem [shape: f32[64,32], index: 1, kind: input, shape index: {}]
  %s2 = inlined_call_operand.vmem [shape: f32[8,64], index: 2, kind: output, shape index: {}]
  %s3 = sld [smem:[#allocation0]]
  $region18: #{_lambda_.1} parent=0
    _
  %s5 = ssub.s32 1, %s3
  %s6 = scalar_select 0, %s5, %s3
  // Predicated region
  $region2: #{_lambda_.1} parent=0 // pred_check
    _
  $region3: #{_lambda_.1} parent=0 // pred_check_branch
    %8 = sbr.rel (0) target = $region5
  $region4: #{_lambda_.1} parent=0 // pred_region
    _
  $region5: #{_lambda_.1} parent=0 // pred_fallthru
    _
  // Predicated region
  $region6: #{_lambda_.1} parent=0 // pred_check
    _
  $region7: #{_lambda_.1} parent=0 // pred_check_branch
    %10 = sbr.rel (0) target = $region9
  $region8: #{_lambda_.1} parent=0 // pred_region
    _
  $region9: #{_lambda_.1} parent=0 // pred_fallthru
    _
  %v11 = vld [vmem:[%s1] sm:$0xff]
  %13 = vrot.lane.b32.xlu0 %v11, 32
  %v14 = vpop.permute.xlu0 %13
  %vm16 = vcmask 261120
  %v17 = vsel %vm16, %v11, %v14
  %v18 = vld [vmem:[%s0] sm:$0xff]
  %v19 = vadd.f32 %v18, %v17
  %vm20 = vcmask 523264
  %21 = vst.msk [vmem:[%s2] sm:$0xff] %vm20, %v19
  // Predicated region
  $region10: #{_lambda_.1} parent=0 // pred_check
    _
  $region11: #{_lambda_.1} parent=0 // pred_check_branch
    %23 = sbr.rel (0) target = $region13
  $region12: #{_lambda_.1} parent=0 // pred_region
    _
  $region13: #{_lambda_.1} parent=0 // pred_fallthru
    _
  // Predicated region
  $region14: #{_lambda_.1} parent=0 // pred_check
    _
  $region15: #{_lambda_.1} parent=0 // pred_check_branch
    %25 = sbr.rel (0) target = $region17
  $region16: #{_lambda_.1} parent=0 // pred_region
    _
  $region17: #{_lambda_.1} parent=0 // pred_fallthru
    _

</llo_original>
